<compile_context>
chip_gen: v5e
topology: v5e:2x2
jax: 0.10.0
libtpu: 0.0.40
codegen_flags: <defaults>
</compile_context>

<pallas_src>
import math

import jax
import jax.numpy as jnp
from jax.experimental import pallas as pl
from jax.experimental.pallas import tpu as pltpu


def _round_up(x, m):
    return ((x + m - 1) // m) * m


def _tile_rows_cap():
    """Per-generation batch-tile cap (rows).

    v6e/v7x comfortably fit 1024-row tiles (~18 MiB of double-buffered input
    + resident weights) inside the 32 MiB default scoped VMEM; v5e's default
    scoped VMEM is 16 MiB, so stay at 512 there (and for unknown devices).
    """
    try:
        kind = jax.devices()[0].device_kind.lower()
        if ("v6" in kind) or ("v7" in kind):
            return 1024
    except Exception:
        pass
    return 512


def _make_inverse_mlp_kernel(n_layers, compute_dtype):
    """Kernel refs: obs, last, W0_obs, W0_last, b0, (W_i, b_i)_{i>=1}, out.

    `subtract` is already folded into W0_obs at packing time, so the kernel
    body is just: cast -> split-K layer-0 matmul -> (ReLU, matmul)* -> store.
    """

    def kernel(obs_ref, last_ref, *rest):
        out_ref = rest[-1]
        params = rest[:-1]

        # In-kernel cast to the (bf16) compute dtype: DMA keeps the source
        # dtype; the VPU cast hides under the MXU work.
        obs = obs_ref[...].astype(compute_dtype)
        last = last_ref[...].astype(compute_dtype)

        # Layer 0: concat eliminated via split weights, two bf16 matmuls summed
        # into the same f32 accumulator (same MXU cycles as one over 2F).
        w0_obs = params[0][...]
        w0_last = params[1][...]
        b0 = params[2][...]                      # f32 bias
        x = (jnp.dot(obs, w0_obs, preferred_element_type=jnp.float32)
             + jnp.dot(last, w0_last, preferred_element_type=jnp.float32)
             + b0)

        # Remaining layers: ReLU after every non-final layer (MlpModel semantics).
        for i in range(1, n_layers):
            x = jnp.maximum(x, 0.0)
            w = params[3 + 2 * (i - 1)][...]
            b = params[4 + 2 * (i - 1)][...]
            x = jnp.dot(x.astype(compute_dtype), w,
                        preferred_element_type=jnp.float32) + b

        out_ref[...] = x.astype(out_ref.dtype)

    return kernel


class InverseModelPallas:
    """JAX/Pallas re-implementation of rlpyt InverseModel (use_input='conv')."""

    def __init__(self, input_size, hidden_sizes, action_size, num_actions,
                 subtract=False, use_input="conv", key=None,
                 compute_dtype=jnp.bfloat16):
        if use_input != "conv":
            raise NotImplementedError
        if key is None:
            key = jax.random.PRNGKey(0)
        self._input_size = int(input_size)
        self._action_size = action_size
        self._num_actions = num_actions
        self._subtract = subtract
        self._compute_dtype = compute_dtype

        hidden_sizes = list(hidden_sizes) if hidden_sizes is not None else []
        layer_sizes = [2 * input_size] + hidden_sizes + [action_size * num_actions]

        # Reference-layout params (f32): W stored [in, out] so x @ W + b matches
        # torch.nn.Linear (x @ W.T + b with torch W of shape [out, in]).
        self.params = []
        for fan_in, fan_out in zip(layer_sizes[:-1], layer_sizes[1:]):
            key, kw, kb = jax.random.split(key, 3)
            bound = 1.0 / math.sqrt(fan_in)
            w = jax.random.uniform(kw, (fan_in, fan_out), jnp.float32, -bound, bound)
            b = jax.random.uniform(kb, (1, fan_out), jnp.float32, -bound, bound)
            self.params.append((w, b))

        # Kernel-side packing:
        #   * split W0 into obs/last halves (no in-kernel concat),
        #   * fold `subtract` into the obs half:
        #       concat([obs, last - obs]) @ W0
        #         == obs @ (W0_obs - W0_last) + last @ W0_last
        #   * zero-pad every layer's output dim (and matching next-layer input
        #     dim) to a 128-lane multiple (exact: padded cols are zero),
        #   * weights in bf16 (MXU), biases stay f32 (added to f32 accumulator).
        out_sizes = layer_sizes[1:]
        self._padded_sizes = [_round_up(s, 128) for s in out_sizes]

        w0, b0 = self.params[0]
        w0_obs, w0_last = w0[:input_size], w0[input_size:]
        if subtract:
            w0_obs = w0_obs - w0_last
        p0 = self._padded_sizes[0]
        kparams = [
            jnp.pad(w0_obs, ((0, 0), (0, p0 - w0_obs.shape[1]))).astype(compute_dtype),
            jnp.pad(w0_last, ((0, 0), (0, p0 - w0_last.shape[1]))).astype(compute_dtype),
            jnp.pad(b0, ((0, 0), (0, p0 - b0.shape[1]))),      # f32
        ]
        for i in range(1, len(self.params)):
            w, b = self.params[i]
            pin = self._padded_sizes[i - 1]
            pout = self._padded_sizes[i]
            kparams.append(
                jnp.pad(w, ((0, pin - w.shape[0]),
                            (0, pout - w.shape[1]))).astype(compute_dtype))
            kparams.append(jnp.pad(b, ((0, 0), (0, pout - b.shape[1]))))   # f32
        self._kernel_params = kparams
        self._tile_cap = _tile_rows_cap()

    def __call__(self, conv_obs, conv_last):
        # infer_leading_dims(conv_obs, 3) with assert lead_dim == 1 -> [B, C, H, W]
        assert conv_obs.ndim == 4 and conv_last.ndim == 4
        B = int(conv_obs.shape[0])
        F = int(conv_obs.shape[1] * conv_obs.shape[2] * conv_obs.shape[3])
        assert F == self._input_size

        # Keep source dtype; cast happens inside the kernel after the DMA.
        obs = conv_obs.reshape(B, F)
        last = conv_last.reshape(B, F)

        # Batch tile: as big as the per-generation cap allows, 8-aligned, with
        # NO wrapper-side padding of the batch (ragged last block is masked).
        TB = min(self._tile_cap, _round_up(B, 8))
        if TB > 512 and TB >= _round_up(B, 8):
            # A single oversized block would cover the whole batch; split into
            # two blocks so the ("parallel",) axis can use both v7x TCs.
            TB = _round_up((B + 1) // 2, 8)
        grid = pl.cdiv(B, TB)

        n_layers = len(self.params)
        out_features = self._action_size * self._num_actions
        out_pad = self._padded_sizes[-1]

        kernel = _make_inverse_mlp_kernel(n_layers, self._compute_dtype)

        in_specs = [
            pl.BlockSpec((TB, F), lambda i: (i, 0)),
            pl.BlockSpec((TB, F), lambda i: (i, 0)),
        ]
        for p in self._kernel_params:
            # Constant index_map -> weights/biases stay VMEM-resident.
            in_specs.append(pl.BlockSpec(p.shape, lambda i: (0, 0)))
        out_specs = pl.BlockSpec((TB, out_pad), lambda i: (i, 0))

        param_bytes = sum(int(p.size) * p.dtype.itemsize for p in self._kernel_params)
        flops = 2 * B * (2 * F * self._padded_sizes[0]
                         + sum(self._padded_sizes[i - 1] * self._padded_sizes[i]
                               for i in range(1, n_layers)))
        bytes_accessed = (2 * B * F * obs.dtype.itemsize
                          + param_bytes
                          + B * out_pad * 4)
        cost = pl.CostEstimate(flops=int(flops), transcendentals=0,
                               bytes_accessed=int(bytes_accessed))

        logits_pad = pl.pallas_call(
            kernel,
            out_shape=jax.ShapeDtypeStruct((B, out_pad), jnp.float32),
            grid_spec=pltpu.PrefetchScalarGridSpec(
                num_scalar_prefetch=0,
                grid=(grid,),
                in_specs=in_specs,
                out_specs=out_specs,
            ),
            compiler_params=pltpu.CompilerParams(
                dimension_semantics=("parallel",),
            ),
            cost_estimate=cost,
        )(obs, last, *self._kernel_params)

        logits = logits_pad[:, :out_features]
        # view(B, num_actions, action_size)
        return logits.reshape(B, self._num_actions, self._action_size)


def _reference_forward(model, conv_obs, conv_last):
    """Pure-JAX f32 reference matching the PyTorch module semantics."""
    B = conv_obs.shape[0]
    obs = conv_obs.reshape(B, -1)
    last = conv_last.reshape(B, -1)
    if model._subtract:
        last = last - obs
    x = jnp.concatenate([obs, last], axis=-1)
    n = len(model.params)
    for i, (w, b) in enumerate(model.params):
        x = x @ w + b
        if i < n - 1:
            x = jnp.maximum(x, 0.0)
    return x.reshape(B, model._num_actions, model._action_size)


if __name__ == "__main__":
    key = jax.random.PRNGKey(0)
    k_obs, k_last, k_params, k_obs2, k_last2 = jax.random.split(key, 5)

    B, C, H, W = 2, 4, 16, 16
    input_size = C * H * W            # 1024
    hidden_sizes = [32]
    action_size = 6
    num_actions = 1

    conv_obs = jax.random.normal(k_obs, (B, C, H, W), jnp.float32)
    conv_last = jax.random.normal(k_last, (B, C, H, W), jnp.float32)

    model = InverseModelPallas(
        input_size=input_size,
        hidden_sizes=hidden_sizes,
        action_size=action_size,
        num_actions=num_actions,
        subtract=False,
        use_input="conv",
        key=k_params,
    )

    act_logits = model(conv_obs, conv_last)
    jax.block_until_ready(act_logits)
    assert act_logits.shape == (B, num_actions, action_size), act_logits.shape

    # bf16 MXU compute vs. exact f32 reference -> loosened tolerance (~1e-2).
    ref = _reference_forward(model, conv_obs, conv_last)
    err = float(jnp.max(jnp.abs(act_logits - ref)))
    assert jnp.allclose(act_logits, ref, atol=5e-2, rtol=5e-2), err

    # subtract=True path (subtraction folded into the packed layer-0 weights).
    model_sub = InverseModelPallas(
        input_size=input_size, hidden_sizes=hidden_sizes,
        action_size=action_size, num_actions=num_actions,
        subtract=True, use_input="conv", key=k_params)
    out_sub = model_sub(conv_obs, conv_last)
    ref_sub = _reference_forward(model_sub, conv_obs, conv_last)
    assert jnp.allclose(out_sub, ref_sub, atol=5e-2, rtol=5e-2)

    # Ragged batch (B not a multiple of the tile / of 8): exercises the cdiv
    # grid + masked out-of-bounds output writes with no wrapper-side padding.
    Br = 13
    conv_obs_r = jax.random.normal(k_obs2, (Br, C, H, W), jnp.float32)
    conv_last_r = jax.random.normal(k_last2, (Br, C, H, W), jnp.float32)
    out_r = model(conv_obs_r, conv_last_r)
    ref_r = _reference_forward(model, conv_obs_r, conv_last_r)
    assert out_r.shape == (Br, num_actions, action_size)
    assert jnp.allclose(out_r, ref_r, atol=5e-2, rtol=5e-2)

    jax.block_until_ready((act_logits, out_sub, out_r))
    print("KERNEL_OK")
</pallas_src>

<mosaic_0001>
module attributes {stable_mosaic.version = 11 : i64} {
  func.func @kernel(%arg0: i32, %arg1: memref<8x1024xf32, #tpu.memory_space<vmem>>, %arg2: memref<8x1024xf32, #tpu.memory_space<vmem>>, %arg3: memref<1024x128xbf16, #tpu.memory_space<vmem>>, %arg4: memref<1024x128xbf16, #tpu.memory_space<vmem>>, %arg5: memref<1x128xf32, #tpu.memory_space<vmem>>, %arg6: memref<128x128xbf16, #tpu.memory_space<vmem>>, %arg7: memref<1x128xf32, #tpu.memory_space<vmem>>, %arg8: memref<8x128xf32, #tpu.memory_space<vmem>>) attributes {dimension_semantics = [#tpu.dimension_semantics<parallel>], iteration_bounds = array<i64: 1>, scalar_prefetch = 0 : i64, scratch_operands = 0 : i64, tpu.core_type = #tpu.core_type<tc>, window_params = [{transform_indices = @transform_0, window_bounds = array<i64: 8, 1024>}, {transform_indices = @transform_1, window_bounds = array<i64: 8, 1024>}, {pipeline_mode = #tpu.pipeline_mode<synchronous>, transform_indices = @transform_2, window_bounds = array<i64: 1024, 128>}, {pipeline_mode = #tpu.pipeline_mode<synchronous>, transform_indices = @transform_3, window_bounds = array<i64: 1024, 128>}, {pipeline_mode = #tpu.pipeline_mode<synchronous>, transform_indices = @transform_4, window_bounds = array<i64: 1, 128>}, {pipeline_mode = #tpu.pipeline_mode<synchronous>, transform_indices = @transform_5, window_bounds = array<i64: 128, 128>}, {pipeline_mode = #tpu.pipeline_mode<synchronous>, transform_indices = @transform_6, window_bounds = array<i64: 1, 128>}, {transform_indices = @transform_7, window_bounds = array<i64: 8, 128>}]} {
    %c0 = arith.constant 0 : index
    %c0_0 = arith.constant 0 : index
    %0 = vector.load %arg1[%c0, %c0_0] : memref<8x1024xf32, #tpu.memory_space<vmem>>, vector<8x1024xf32>
    %1 = arith.truncf %0 : vector<8x1024xf32> to vector<8x1024xbf16>
    %c0_1 = arith.constant 0 : index
    %c0_2 = arith.constant 0 : index
    %2 = vector.load %arg2[%c0_1, %c0_2] : memref<8x1024xf32, #tpu.memory_space<vmem>>, vector<8x1024xf32>
    %3 = arith.truncf %2 : vector<8x1024xf32> to vector<8x1024xbf16>
    %c0_3 = arith.constant 0 : index
    %c0_4 = arith.constant 0 : index
    %4 = vector.load %arg3[%c0_3, %c0_4] : memref<1024x128xbf16, #tpu.memory_space<vmem>>, vector<1024x128xbf16>
    %c0_5 = arith.constant 0 : index
    %c0_6 = arith.constant 0 : index
    %5 = vector.load %arg4[%c0_5, %c0_6] : memref<1024x128xbf16, #tpu.memory_space<vmem>>, vector<1024x128xbf16>
    %c0_7 = arith.constant 0 : index
    %c0_8 = arith.constant 0 : index
    %6 = vector.load %arg5[%c0_7, %c0_8] : memref<1x128xf32, #tpu.memory_space<vmem>>, vector<1x128xf32>
    %cst = arith.constant dense<0.000000e+00> : vector<8x128xf32>
    %7 = tpu.matmul %1, %4, %cst {dimension_numbers = #tpu.dot_dimension_numbers<[1], [0], [0], [1], [0, 0, 1, 1], [], []>} : vector<8x1024xbf16>, vector<1024x128xbf16>, vector<8x128xf32> -> vector<8x128xf32>
    %cst_9 = arith.constant dense<0.000000e+00> : vector<8x128xf32>
    %8 = tpu.matmul %3, %5, %cst_9 {dimension_numbers = #tpu.dot_dimension_numbers<[1], [0], [0], [1], [0, 0, 1, 1], [], []>} : vector<8x1024xbf16>, vector<1024x128xbf16>, vector<8x128xf32> -> vector<8x128xf32>
    %9 = arith.addf %7, %8 : vector<8x128xf32>
    %10 = vector.broadcast %6 : vector<1x128xf32> to vector<8x128xf32>
    %11 = arith.addf %9, %10 : vector<8x128xf32>
    %cst_10 = arith.constant 0.000000e+00 : f32
    %12 = vector.broadcast %cst_10 : f32 to vector<8x128xf32>
    %13 = arith.maximumf %11, %12 : vector<8x128xf32>
    %c0_11 = arith.constant 0 : index
    %c0_12 = arith.constant 0 : index
    %14 = vector.load %arg6[%c0_11, %c0_12] : memref<128x128xbf16, #tpu.memory_space<vmem>>, vector<128x128xbf16>
    %c0_13 = arith.constant 0 : index
    %c0_14 = arith.constant 0 : index
    %15 = vector.load %arg7[%c0_13, %c0_14] : memref<1x128xf32, #tpu.memory_space<vmem>>, vector<1x128xf32>
    %16 = arith.truncf %13 : vector<8x128xf32> to vector<8x128xbf16>
    %cst_15 = arith.constant dense<0.000000e+00> : vector<8x128xf32>
    %17 = tpu.matmul %16, %14, %cst_15 {dimension_numbers = #tpu.dot_dimension_numbers<[1], [0], [0], [1], [0, 0, 1, 1], [], []>} : vector<8x128xbf16>, vector<128x128xbf16>, vector<8x128xf32> -> vector<8x128xf32>
    %18 = vector.broadcast %15 : vector<1x128xf32> to vector<8x128xf32>
    %19 = arith.addf %17, %18 : vector<8x128xf32>
    %c0_16 = arith.constant 0 : index
    %c0_17 = arith.constant 0 : index
    %20 = vector.load %arg8[%c0_16, %c0_17] : memref<8x128xf32, #tpu.memory_space<vmem>>, vector<8x128xf32>
    tpu.vector_store %arg8[%c0_16, %c0_17], %19 {strides = array<i32>} : memref<8x128xf32, #tpu.memory_space<vmem>>, vector<8x128xf32>,
    return
  }
  func.func @transform_0(%arg0: i32) -> (i32, i32) {
    %c0_i32 = arith.constant 0 : i32
    %c0_i32_0 = arith.constant 0 : i32
    return %arg0, %c0_i32 : i32, i32
  }
  func.func @transform_1(%arg0: i32) -> (i32, i32) {
    %c0_i32 = arith.constant 0 : i32
    %c0_i32_0 = arith.constant 0 : i32
    return %arg0, %c0_i32 : i32, i32
  }
  func.func @transform_2(%arg0: i32) -> (i32, i32) {
    %c0_i32 = arith.constant 0 : i32
    %c0_i32_0 = arith.constant 0 : i32
    %c0_i32_1 = arith.constant 0 : i32
    return %c0_i32, %c0_i32_0 : i32, i32
  }
  func.func @transform_3(%arg0: i32) -> (i32, i32) {
    %c0_i32 = arith.constant 0 : i32
    %c0_i32_0 = arith.constant 0 : i32
    %c0_i32_1 = arith.constant 0 : i32
    return %c0_i32, %c0_i32_0 : i32, i32
  }
  func.func @transform_4(%arg0: i32) -> (i32, i32) {
    %c0_i32 = arith.constant 0 : i32
    %c0_i32_0 = arith.constant 0 : i32
    %c0_i32_1 = arith.constant 0 : i32
    return %c0_i32, %c0_i32_0 : i32, i32
  }
  func.func @transform_5(%arg0: i32) -> (i32, i32) {
    %c0_i32 = arith.constant 0 : i32
    %c0_i32_0 = arith.constant 0 : i32
    %c0_i32_1 = arith.constant 0 : i32
    return %c0_i32, %c0_i32_0 : i32, i32
  }
  func.func @transform_6(%arg0: i32) -> (i32, i32) {
    %c0_i32 = arith.constant 0 : i32
    %c0_i32_0 = arith.constant 0 : i32
    %c0_i32_1 = arith.constant 0 : i32
    return %c0_i32, %c0_i32_0 : i32, i32
  }
  func.func @transform_7(%arg0: i32) -> (i32, i32) {
    %c0_i32 = arith.constant 0 : i32
    %c0_i32_0 = arith.constant 0 : i32
    return %arg0, %c0_i32 : i32, i32
  }
}

</mosaic_0001>

<llo_original>
// kernel: tpu_custom_call.1
$region0: #{tpu_custom_call.1}
  #allocation0 [shape = 'u32[]', space=smem, size = 0x4, offset = 0x4, fixed_abs, tag = 'smem constant byte address 0x4 - core index']
  #allocation1 [shape = 'u32[72,128]{1,0:T(1,128)}', space=vmem, size = 0x9000, scoped, tag = 'internal scratch']
  %s0 = inlined_call_operand.hbm [shape: f32[2,1024], index: 0, kind: input, shape index: {}]
  %s1 = inlined_call_operand.hbm [shape: f32[2,1024], index: 1, kind: input, shape index: {}]
  %s2 = inlined_call_operand.hbm [shape: bf16[1024,128], index: 2, kind: input, shape index: {}]
  %s3 = inlined_call_operand.hbm [shape: bf16[1024,128], index: 3, kind: input, shape index: {}]
  %s4 = inlined_call_operand.vmem [shape: f32[1,128], index: 4, kind: input, shape index: {}]
  %s5 = inlined_call_operand.hbm [shape: bf16[128,128], index: 5, kind: input, shape index: {}]
  %s6 = inlined_call_operand.vmem [shape: f32[1,128], index: 6, kind: input, shape index: {}]
  %s7 = inlined_call_operand.hbm [shape: f32[2,128], index: 7, kind: output, shape index: {}]
  %s8 = sld [smem:[#allocation0]]
  $region58: #{tpu_custom_call.1} parent=0
    _
  %s10 = ssub.s32 1, %s8
  %s11 = scalar_select 0, %s10, %s8
  $region1: #{tpu_custom_call.1} parent=0
    #allocation2 [shape = 'u8[32768]{0}', space=vmem, size = 0x8000, scoped, tag = 'input window, operand 0, single buffered']
    #allocation3 [shape = 's32[1]{0}', space=sflag, size = 0x4, scoped, tag = 'scoped memory for tpu_custom_call.1']
    #allocation4 [shape = 's32[1]{0}', space=sflag, size = 0x4, scoped, tag = 'scoped memory for tpu_custom_call.1']
    #allocation5 [shape = 'u8[32768]{0}', space=vmem, size = 0x8000, scoped, tag = 'input window, operand 1, single buffered']
    #allocation6 [shape = 's32[1]{0}', space=sflag, size = 0x4, scoped, tag = 'scoped memory for tpu_custom_call.1']
    #allocation7 [shape = 'u8[262144]{0}', space=vmem, size = 0x40000, scoped, tag = 'input window, operand 2, single buffered']
    #allocation8 [shape = 'u8[262144]{0}', space=vmem, size = 0x40000, scoped, tag = 'input window, operand 3, single buffered']
    #allocation9 [shape = 's32[1]{0}', space=sflag, size = 0x4, scoped, tag = 'scoped memory for tpu_custom_call.1']
    #allocation10 [shape = 'u8[32768]{0}', space=vmem, size = 0x8000, scoped, tag = 'input window, operand 5, single buffered']
    #allocation11 [shape = 'u8[4096]{0}', space=vmem, size = 0x1000, scoped, tag = 'output window, operand 0, single buffered']
    %12 = vsyncpa [#allocation3], 0
    %13 = vsyncpa [#allocation6], 0
    %14 = vsyncpa [#allocation9], 0
    %15 = vsyncpa [#allocation4], 0
    // Predicated region
    $region2: #{tpu_custom_call.1} parent=1 // pred_check
      _
    $region3: #{tpu_custom_call.1} parent=1 // pred_check_branch
      %17 = sbr.rel (0) target = $region5
    $region4: #{tpu_custom_call.1} parent=1 // pred_region
      %19 = vsyncadd [#allocation3], 768
      %s20 = sshll.u32 %s0, 4
      %s21 = int_to_ptr.hbm [resolvable:$true] %s20
      %s22 = sshll.u32 [#allocation2], 4
      %s23 = int_to_ptr.vmem [resolvable:$true] %s22
      %28 = dma.hbm_to_vmem [thread:$0]  %s21, 256, %s23, [#allocation3], 256, 256, 16
    $region5: #{tpu_custom_call.1} parent=1 // pred_fallthru
      _
    // Predicated region
    $region6: #{tpu_custom_call.1} parent=1 // pred_check
      _
    $region7: #{tpu_custom_call.1} parent=1 // pred_check_branch
      %30 = sbr.rel (0) target = $region9
    $region8: #{tpu_custom_call.1} parent=1 // pred_region
      %32 = vsyncadd [#allocation6], 768
      %s33 = sshll.u32 %s1, 4
      %s34 = int_to_ptr.hbm [resolvable:$true] %s33
      %s35 = sshll.u32 [#allocation5], 4
      %s36 = int_to_ptr.vmem [resolvable:$true] %s35
      %41 = dma.hbm_to_vmem [thread:$0]  %s34, 256, %s36, [#allocation6], 256, 256, 16
    $region9: #{tpu_custom_call.1} parent=1 // pred_fallthru
      _
    // Predicated region
    $region10: #{tpu_custom_call.1} parent=1 // pred_check
      _
    $region11: #{tpu_custom_call.1} parent=1 // pred_check_branch
      %43 = sbr.rel (0) target = $region13
    $region12: #{tpu_custom_call.1} parent=1 // pred_region
      %45 = vsyncadd [#allocation6], 0
      %s46 = sshll.u32 %s2, 4
      %s47 = int_to_ptr.hbm [resolvable:$true] %s46
      %s48 = sshll.u32 [#allocation7], 4
      %s49 = int_to_ptr.vmem [resolvable:$true] %s48
      %54 = dma.hbm_to_vmem [thread:$0]  %s47, 8192, %s49, [#allocation6], 64, 64, 4
    $region13: #{tpu_custom_call.1} parent=1 // pred_fallthru
      _
    // Predicated region
    $region14: #{tpu_custom_call.1} parent=1 // pred_check
      _
    $region15: #{tpu_custom_call.1} parent=1 // pred_check_branch
      %56 = sbr.rel (0) target = $region17
    $region16: #{tpu_custom_call.1} parent=1 // pred_region
      %58 = vsyncadd [#allocation9], 0
      %s59 = sshll.u32 %s3, 4
      %s60 = int_to_ptr.hbm [resolvable:$true] %s59
      %s61 = sshll.u32 [#allocation8], 4
      %s62 = int_to_ptr.vmem [resolvable:$true] %s61
      %67 = dma.hbm_to_vmem [thread:$0]  %s60, 8192, %s62, [#allocation9], 64, 64, 4
    $region17: #{tpu_custom_call.1} parent=1 // pred_fallthru
      _
    // Predicated region
    $region18: #{tpu_custom_call.1} parent=1 // pred_check
      _
    $region19: #{tpu_custom_call.1} parent=1 // pred_check_branch
      %69 = sbr.rel (0) target = $region21
    $region20: #{tpu_custom_call.1} parent=1 // pred_region
      _
    $region21: #{tpu_custom_call.1} parent=1 // pred_fallthru
      _
    // Predicated region
    $region22: #{tpu_custom_call.1} parent=1 // pred_check
      _
    $region23: #{tpu_custom_call.1} parent=1 // pred_check_branch
      %71 = sbr.rel (0) target = $region25
    $region24: #{tpu_custom_call.1} parent=1 // pred_region
      %73 = vsyncadd [#allocation9], 0
      %s74 = sshll.u32 %s5, 4
      %s75 = int_to_ptr.hbm [resolvable:$true] %s74
      %s76 = sshll.u32 [#allocation10], 4
      %s77 = int_to_ptr.vmem [resolvable:$true] %s76
      %82 = dma.hbm_to_vmem [thread:$0]  %s75, 1024, %s77, [#allocation9], 64, 64, 4
    $region25: #{tpu_custom_call.1} parent=1 // pred_fallthru
      _
    // Predicated region
    $region26: #{tpu_custom_call.1} parent=1 // pred_check
      _
    $region27: #{tpu_custom_call.1} parent=1 // pred_check_branch
      %84 = sbr.rel (0) target = $region29
    $region28: #{tpu_custom_call.1} parent=1 // pred_region
      _
    $region29: #{tpu_custom_call.1} parent=1 // pred_fallthru
      _
    // Predicated region
    $region30: #{tpu_custom_call.1} parent=1 // pred_check
      _
    $region31: #{tpu_custom_call.1} parent=1 // pred_check_branch
      %86 = sbr.rel (0) target = $region33
    $region32: #{tpu_custom_call.1} parent=1 // pred_region
      %88 = dma.done [#allocation3], 1024
    $region33: #{tpu_custom_call.1} parent=1 // pred_fallthru
      _
    // Predicated region
    $region34: #{tpu_custom_call.1} parent=1 // pred_check
      _
    $region35: #{tpu_custom_call.1} parent=1 // pred_check_branch
      %90 = sbr.rel (0) target = $region37
    $region36: #{tpu_custom_call.1} parent=1 // pred_region
      %92 = dma.done [#allocation6], 1024
    $region37: #{tpu_custom_call.1} parent=1 // pred_fallthru
      _
    // Predicated region
    $region38: #{tpu_custom_call.1} parent=1 // pred_check
      _
    $region39: #{tpu_custom_call.1} parent=1 // pred_check_branch
      %94 = sbr.rel (0) target = $region41
    $region40: #{tpu_custom_call.1} parent=1 // pred_region
      %96 = dma.done [#allocation6], 8192
    $region41: #{tpu_custom_call.1} parent=1 // pred_fallthru
      _
    // Predicated region
    $region42: #{tpu_custom_call.1} parent=1 // pred_check
      _
    $region43: #{tpu_custom_call.1} parent=1 // pred_check_branch
      %98 = sbr.rel (0) target = $region45
    $region44: #{tpu_custom_call.1} parent=1 // pred_region
      %100 = dma.done [#allocation9], 8192
    $region45: #{tpu_custom_call.1} parent=1 // pred_fallthru
      _
    // Predicated region
    $region46: #{tpu_custom_call.1} parent=1 // pred_check
      _
    $region47: #{tpu_custom_call.1} parent=1 // pred_check_branch
      %102 = sbr.rel (0) target = $region49
    $region48: #{tpu_custom_call.1} parent=1 // pred_region
      %104 = dma.done [#allocation9], 1024
    $region49: #{tpu_custom_call.1} parent=1 // pred_fallthru
      _
    %v105 = vld [vmem:[#allocation2] sm:$0xff]
    %v106 = vld [vmem:[#allocation2 + $0x8] sm:$0xff]
    %v107 = vld [vmem:[#allocation2 + $0x10] sm:$0xff]
    %v108 = vld [vmem:[#allocation2 + $0x18] sm:$0xff]
    %v109 = vld [vmem:[#allocation2 + $0x20] sm:$0xff]
    %v110 = vld [vmem:[#allocation2 + $0x28] sm:$0xff]
    %v111 = vld [vmem:[#allocation2 + $0x30] sm:$0xff]
    %v112 = vld [vmem:[#allocation2 + $0x38] sm:$0xff]
    %121 = vst [vmem:[#allocation1] ss:$4 sm:$0xff] %v105
    %s122 = scalar_lea.vmem [#allocation1], 1
    %123 = vst [vmem:[%s122] ss:$4 sm:$0xff] %v107
    %s124 = scalar_lea.vmem [#allocation1], 2
    %125 = vst [vmem:[%s124] ss:$4 sm:$0xff] %v109
    %s126 = scalar_lea.vmem [#allocation1], 3
    %127 = vst [vmem:[%s126] ss:$4 sm:$0xff] %v111
    %s128 = scalar_lea.vmem [#allocation1], 32
    %129 = vst [vmem:[%s128] ss:$4 sm:$0xff] %v106
    %s130 = scalar_lea.vmem [#allocation1], 33
    %131 = vst [vmem:[%s130] ss:$4 sm:$0xff] %v108
    %s132 = scalar_lea.vmem [#allocation1], 34
    %133 = vst [vmem:[%s132] ss:$4 sm:$0xff] %v110
    %s134 = scalar_lea.vmem [#allocation1], 35
    %135 = vst [vmem:[%s134] ss:$4 sm:$0xff] %v112
    %v136 = vld.sshfl [vmem:[#allocation1] sm:$0xff pattern:$0x73625140]
    %v137 = vld.sshfl [vmem:[#allocation1 + $0x8] sm:$0xff pattern:$0x73625140]
    %v138 = vld.sshfl [vmem:[#allocation1 + $0x10] sm:$0xff pattern:$0x73625140]
    %v139 = vld.sshfl [vmem:[#allocation1 + $0x18] sm:$0xff pattern:$0x73625140]
    %v140 = vld.sshfl [vmem:[#allocation1 + $0x20] sm:$0xff pattern:$0x73625140]
    %v141 = vld.sshfl [vmem:[#allocation1 + $0x28] sm:$0xff pattern:$0x73625140]
    %v142 = vld.sshfl [vmem:[#allocation1 + $0x30] sm:$0xff pattern:$0x73625140]
    %v143 = vld.sshfl [vmem:[#allocation1 + $0x38] sm:$0xff pattern:$0x73625140]
    %v152 = vpack.c.bf16 %v136, %v136
    %v153 = vpack.c.bf16 %v137, %v137
    %v154 = vpack.c.bf16 %v138, %v138
    %v155 = vpack.c.bf16 %v139, %v139
    %v156 = vpack.c.bf16 %v140, %v140
    %v157 = vpack.c.bf16 %v141, %v141
    %v158 = vpack.c.bf16 %v142, %v142
    %v159 = vpack.c.bf16 %v143, %v143
    %v160 = vld [vmem:[#allocation5] sm:$0xff]
    %v161 = vld [vmem:[#allocation5 + $0x8] sm:$0xff]
    %v162 = vld [vmem:[#allocation5 + $0x10] sm:$0xff]
    %v163 = vld [vmem:[#allocation5 + $0x18] sm:$0xff]
    %v164 = vld [vmem:[#allocation5 + $0x20] sm:$0xff]
    %v165 = vld [vmem:[#allocation5 + $0x28] sm:$0xff]
    %v166 = vld [vmem:[#allocation5 + $0x30] sm:$0xff]
    %v167 = vld [vmem:[#allocation5 + $0x38] sm:$0xff]
    %176 = vst [vmem:[#allocation1] ss:$4 sm:$0xff] %v160
    %s177 = scalar_lea.vmem [#allocation1], 1
    %178 = vst [vmem:[%s177] ss:$4 sm:$0xff] %v162
    %s179 = scalar_lea.vmem [#allocation1], 2
    %180 = vst [vmem:[%s179] ss:$4 sm:$0xff] %v164
    %s181 = scalar_lea.vmem [#allocation1], 3
    %182 = vst [vmem:[%s181] ss:$4 sm:$0xff] %v166
    %s183 = scalar_lea.vmem [#allocation1], 32
    %184 = vst [vmem:[%s183] ss:$4 sm:$0xff] %v161
    %s185 = scalar_lea.vmem [#allocation1], 33
    %186 = vst [vmem:[%s185] ss:$4 sm:$0xff] %v163
    %s187 = scalar_lea.vmem [#allocation1], 34
    %188 = vst [vmem:[%s187] ss:$4 sm:$0xff] %v165
    %s189 = scalar_lea.vmem [#allocation1], 35
    %190 = vst [vmem:[%s189] ss:$4 sm:$0xff] %v167
    %v191 = vld.sshfl [vmem:[#allocation1] sm:$0xff pattern:$0x73625140]
    %v192 = vld.sshfl [vmem:[#allocation1 + $0x8] sm:$0xff pattern:$0x73625140]
    %v193 = vld.sshfl [vmem:[#allocation1 + $0x10] sm:$0xff pattern:$0x73625140]
    %v194 = vld.sshfl [vmem:[#allocation1 + $0x18] sm:$0xff pattern:$0x73625140]
    %v195 = vld.sshfl [vmem:[#allocation1 + $0x20] sm:$0xff pattern:$0x73625140]
    %v196 = vld.sshfl [vmem:[#allocation1 + $0x28] sm:$0xff pattern:$0x73625140]
    %v197 = vld.sshfl [vmem:[#allocation1 + $0x30] sm:$0xff pattern:$0x73625140]
    %v198 = vld.sshfl [vmem:[#allocation1 + $0x38] sm:$0xff pattern:$0x73625140]
    %v207 = vpack.c.bf16 %v191, %v191
    %v208 = vpack.c.bf16 %v192, %v192
    %v209 = vpack.c.bf16 %v193, %v193
    %v210 = vpack.c.bf16 %v194, %v194
    %v211 = vpack.c.bf16 %v195, %v195
    %v212 = vpack.c.bf16 %v196, %v196
    %v213 = vpack.c.bf16 %v197, %v197
    %v214 = vpack.c.bf16 %v198, %v198
    %v215 = vld [vmem:[#allocation7] sm:$0xf]
    %v216 = vld [vmem:[#allocation7 + $0x4] sm:$0xf]
    %v217 = vld [vmem:[#allocation7 + $0x8] sm:$0xf]
    %v218 = vld [vmem:[#allocation7 + $0xc] sm:$0xf]
    %v219 = vld [vmem:[#allocation7 + $0x10] sm:$0xf]
    %v220 = vld [vmem:[#allocation7 + $0x14] sm:$0xf]
    %v221 = vld [vmem:[#allocation7 + $0x18] sm:$0xf]
    %v222 = vld [vmem:[#allocation7 + $0x1c] sm:$0xf]
    %v223 = vld [vmem:[#allocation7 + $0x20] sm:$0xf]
    %v224 = vld [vmem:[#allocation7 + $0x24] sm:$0xf]
    %v225 = vld [vmem:[#allocation7 + $0x28] sm:$0xf]
    %v226 = vld [vmem:[#allocation7 + $0x2c] sm:$0xf]
    %v227 = vld [vmem:[#allocation7 + $0x30] sm:$0xf]
    %v228 = vld [vmem:[#allocation7 + $0x34] sm:$0xf]
    %v229 = vld [vmem:[#allocation7 + $0x38] sm:$0xf]
    %v230 = vld [vmem:[#allocation7 + $0x3c] sm:$0xf]
    %v231 = vld [vmem:[#allocation7 + $0x40] sm:$0xf]
    %v232 = vld [vmem:[#allocation7 + $0x44] sm:$0xf]
    %v233 = vld [vmem:[#allocation7 + $0x48] sm:$0xf]
    %v234 = vld [vmem:[#allocation7 + $0x4c] sm:$0xf]
    %v235 = vld [vmem:[#allocation7 + $0x50] sm:$0xf]
    %v236 = vld [vmem:[#allocation7 + $0x54] sm:$0xf]
    %v237 = vld [vmem:[#allocation7 + $0x58] sm:$0xf]
    %v238 = vld [vmem:[#allocation7 + $0x5c] sm:$0xf]
    %v239 = vld [vmem:[#allocation7 + $0x60] sm:$0xf]
    %v240 = vld [vmem:[#allocation7 + $0x64] sm:$0xf]
    %v241 = vld [vmem:[#allocation7 + $0x68] sm:$0xf]
    %v242 = vld [vmem:[#allocation7 + $0x6c] sm:$0xf]
    %v243 = vld [vmem:[#allocation7 + $0x70] sm:$0xf]
    %v244 = vld [vmem:[#allocation7 + $0x74] sm:$0xf]
    %v245 = vld [vmem:[#allocation7 + $0x78] sm:$0xf]
    %v246 = vld [vmem:[#allocation7 + $0x7c] sm:$0xf]
    %v247 = vld [vmem:[#allocation7 + $0x80] sm:$0xf]
    %v248 = vld [vmem:[#allocation7 + $0x84] sm:$0xf]
    %v249 = vld [vmem:[#allocation7 + $0x88] sm:$0xf]
    %v250 = vld [vmem:[#allocation7 + $0x8c] sm:$0xf]
    %v251 = vld [vmem:[#allocation7 + $0x90] sm:$0xf]
    %v252 = vld [vmem:[#allocation7 + $0x94] sm:$0xf]
    %v253 = vld [vmem:[#allocation7 + $0x98] sm:$0xf]
    %v254 = vld [vmem:[#allocation7 + $0x9c] sm:$0xf]
    %v255 = vld [vmem:[#allocation7 + $0xa0] sm:$0xf]
    %v256 = vld [vmem:[#allocation7 + $0xa4] sm:$0xf]
    %v257 = vld [vmem:[#allocation7 + $0xa8] sm:$0xf]
    %v258 = vld [vmem:[#allocation7 + $0xac] sm:$0xf]
    %v259 = vld [vmem:[#allocation7 + $0xb0] sm:$0xf]
    %v260 = vld [vmem:[#allocation7 + $0xb4] sm:$0xf]
    %v261 = vld [vmem:[#allocation7 + $0xb8] sm:$0xf]
    %v262 = vld [vmem:[#allocation7 + $0xbc] sm:$0xf]
    %v263 = vld [vmem:[#allocation7 + $0xc0] sm:$0xf]
    %v264 = vld [vmem:[#allocation7 + $0xc4] sm:$0xf]
    %v265 = vld [vmem:[#allocation7 + $0xc8] sm:$0xf]
    %v266 = vld [vmem:[#allocation7 + $0xcc] sm:$0xf]
    %v267 = vld [vmem:[#allocation7 + $0xd0] sm:$0xf]
    %v268 = vld [vmem:[#allocation7 + $0xd4] sm:$0xf]
    %v269 = vld [vmem:[#allocation7 + $0xd8] sm:$0xf]
    %v270 = vld [vmem:[#allocation7 + $0xdc] sm:$0xf]
    %v271 = vld [vmem:[#allocation7 + $0xe0] sm:$0xf]
    %v272 = vld [vmem:[#allocation7 + $0xe4] sm:$0xf]
    %v273 = vld [vmem:[#allocation7 + $0xe8] sm:$0xf]
    %v274 = vld [vmem:[#allocation7 + $0xec] sm:$0xf]
    %v275 = vld [vmem:[#allocation7 + $0xf0] sm:$0xf]
    %v276 = vld [vmem:[#allocation7 + $0xf4] sm:$0xf]
    %v277 = vld [vmem:[#allocation7 + $0xf8] sm:$0xf]
    %v278 = vld [vmem:[#allocation7 + $0xfc] sm:$0xf]
    %v279 = vld [vmem:[#allocation7 + $0x100] sm:$0xf]
    %v280 = vld [vmem:[#allocation7 + $0x104] sm:$0xf]
    %v281 = vld [vmem:[#allocation7 + $0x108] sm:$0xf]
    %v282 = vld [vmem:[#allocation7 + $0x10c] sm:$0xf]
    %v283 = vld [vmem:[#allocation7 + $0x110] sm:$0xf]
    %v284 = vld [vmem:[#allocation7 + $0x114] sm:$0xf]
    %v285 = vld [vmem:[#allocation7 + $0x118] sm:$0xf]
    %v286 = vld [vmem:[#allocation7 + $0x11c] sm:$0xf]
    %v287 = vld [vmem:[#allocation7 + $0x120] sm:$0xf]
    %v288 = vld [vmem:[#allocation7 + $0x124] sm:$0xf]
    %v289 = vld [vmem:[#allocation7 + $0x128] sm:$0xf]
    %v290 = vld [vmem:[#allocation7 + $0x12c] sm:$0xf]
    %v291 = vld [vmem:[#allocation7 + $0x130] sm:$0xf]
    %v292 = vld [vmem:[#allocation7 + $0x134] sm:$0xf]
    %v293 = vld [vmem:[#allocation7 + $0x138] sm:$0xf]
    %v294 = vld [vmem:[#allocation7 + $0x13c] sm:$0xf]
    %v295 = vld [vmem:[#allocation7 + $0x140] sm:$0xf]
    %v296 = vld [vmem:[#allocation7 + $0x144] sm:$0xf]
    %v297 = vld [vmem:[#allocation7 + $0x148] sm:$0xf]
    %v298 = vld [vmem:[#allocation7 + $0x14c] sm:$0xf]
    %v299 = vld [vmem:[#allocation7 + $0x150] sm:$0xf]
    %v300 = vld [vmem:[#allocation7 + $0x154] sm:$0xf]
    %v301 = vld [vmem:[#allocation7 + $0x158] sm:$0xf]
    %v302 = vld [vmem:[#allocation7 + $0x15c] sm:$0xf]
    %v303 = vld [vmem:[#allocation7 + $0x160] sm:$0xf]
    %v304 = vld [vmem:[#allocation7 + $0x164] sm:$0xf]
    %v305 = vld [vmem:[#allocation7 + $0x168] sm:$0xf]
    %v306 = vld [vmem:[#allocation7 + $0x16c] sm:$0xf]
    %v307 = vld [vmem:[#allocation7 + $0x170] sm:$0xf]
    %v308 = vld [vmem:[#allocation7 + $0x174] sm:$0xf]
    %v309 = vld [vmem:[#allocation7 + $0x178] sm:$0xf]
    %v310 = vld [vmem:[#allocation7 + $0x17c] sm:$0xf]
    %v311 = vld [vmem:[#allocation7 + $0x180] sm:$0xf]
    %v312 = vld [vmem:[#allocation7 + $0x184] sm:$0xf]
    %v313 = vld [vmem:[#allocation7 + $0x188] sm:$0xf]
    %v314 = vld [vmem:[#allocation7 + $0x18c] sm:$0xf]
    %v315 = vld [vmem:[#allocation7 + $0x190] sm:$0xf]
    %v316 = vld [vmem:[#allocation7 + $0x194] sm:$0xf]
    %v317 = vld [vmem:[#allocation7 + $0x198] sm:$0xf]
    %v318 = vld [vmem:[#allocation7 + $0x19c] sm:$0xf]
    %v319 = vld [vmem:[#allocation7 + $0x1a0] sm:$0xf]
    %v320 = vld [vmem:[#allocation7 + $0x1a4] sm:$0xf]
    %v321 = vld [vmem:[#allocation7 + $0x1a8] sm:$0xf]
    %v322 = vld [vmem:[#allocation7 + $0x1ac] sm:$0xf]
    %v323 = vld [vmem:[#allocation7 + $0x1b0] sm:$0xf]
    %v324 = vld [vmem:[#allocation7 + $0x1b4] sm:$0xf]
    %v325 = vld [vmem:[#allocation7 + $0x1b8] sm:$0xf]
    %v326 = vld [vmem:[#allocation7 + $0x1bc] sm:$0xf]
    %v327 = vld [vmem:[#allocation7 + $0x1c0] sm:$0xf]
    %v328 = vld [vmem:[#allocation7 + $0x1c4] sm:$0xf]
    %v329 = vld [vmem:[#allocation7 + $0x1c8] sm:$0xf]
    %v330 = vld [vmem:[#allocation7 + $0x1cc] sm:$0xf]
    %v331 = vld [vmem:[#allocation7 + $0x1d0] sm:$0xf]
    %v332 = vld [vmem:[#allocation7 + $0x1d4] sm:$0xf]
    %v333 = vld [vmem:[#allocation7 + $0x1d8] sm:$0xf]
    %v334 = vld [vmem:[#allocation7 + $0x1dc] sm:$0xf]
    %v335 = vld [vmem:[#allocation7 + $0x1e0] sm:$0xf]
    %v336 = vld [vmem:[#allocation7 + $0x1e4] sm:$0xf]
    %v337 = vld [vmem:[#allocation7 + $0x1e8] sm:$0xf]
    %v338 = vld [vmem:[#allocation7 + $0x1ec] sm:$0xf]
    %v339 = vld [vmem:[#allocation7 + $0x1f0] sm:$0xf]
    %v340 = vld [vmem:[#allocation7 + $0x1f4] sm:$0xf]
    %v341 = vld [vmem:[#allocation7 + $0x1f8] sm:$0xf]
    %v342 = vld [vmem:[#allocation7 + $0x1fc] sm:$0xf]
    %v343 = vld [vmem:[#allocation8] sm:$0xf]
    %v344 = vld [vmem:[#allocation8 + $0x4] sm:$0xf]
    %v345 = vld [vmem:[#allocation8 + $0x8] sm:$0xf]
    %v346 = vld [vmem:[#allocation8 + $0xc] sm:$0xf]
    %v347 = vld [vmem:[#allocation8 + $0x10] sm:$0xf]
    %v348 = vld [vmem:[#allocation8 + $0x14] sm:$0xf]
    %v349 = vld [vmem:[#allocation8 + $0x18] sm:$0xf]
    %v350 = vld [vmem:[#allocation8 + $0x1c] sm:$0xf]
    %v351 = vld [vmem:[#allocation8 + $0x20] sm:$0xf]
    %v352 = vld [vmem:[#allocation8 + $0x24] sm:$0xf]
    %v353 = vld [vmem:[#allocation8 + $0x28] sm:$0xf]
    %v354 = vld [vmem:[#allocation8 + $0x2c] sm:$0xf]
    %v355 = vld [vmem:[#allocation8 + $0x30] sm:$0xf]
    %v356 = vld [vmem:[#allocation8 + $0x34] sm:$0xf]
    %v357 = vld [vmem:[#allocation8 + $0x38] sm:$0xf]
    %v358 = vld [vmem:[#allocation8 + $0x3c] sm:$0xf]
    %v359 = vld [vmem:[#allocation8 + $0x40] sm:$0xf]
    %v360 = vld [vmem:[#allocation8 + $0x44] sm:$0xf]
    %v361 = vld [vmem:[#allocation8 + $0x48] sm:$0xf]
    %v362 = vld [vmem:[#allocation8 + $0x4c] sm:$0xf]
    %v363 = vld [vmem:[#allocation8 + $0x50] sm:$0xf]
    %v364 = vld [vmem:[#allocation8 + $0x54] sm:$0xf]
    %v365 = vld [vmem:[#allocation8 + $0x58] sm:$0xf]
    %v366 = vld [vmem:[#allocation8 + $0x5c] sm:$0xf]
    %v367 = vld [vmem:[#allocation8 + $0x60] sm:$0xf]
    %v368 = vld [vmem:[#allocation8 + $0x64] sm:$0xf]
    %v369 = vld [vmem:[#allocation8 + $0x68] sm:$0xf]
    %v370 = vld [vmem:[#allocation8 + $0x6c] sm:$0xf]
    %v371 = vld [vmem:[#allocation8 + $0x70] sm:$0xf]
    %v372 = vld [vmem:[#allocation8 + $0x74] sm:$0xf]
    %v373 = vld [vmem:[#allocation8 + $0x78] sm:$0xf]
    %v374 = vld [vmem:[#allocation8 + $0x7c] sm:$0xf]
    %v375 = vld [vmem:[#allocation8 + $0x80] sm:$0xf]
    %v376 = vld [vmem:[#allocation8 + $0x84] sm:$0xf]
    %v377 = vld [vmem:[#allocation8 + $0x88] sm:$0xf]
    %v378 = vld [vmem:[#allocation8 + $0x8c] sm:$0xf]
    %v379 = vld [vmem:[#allocation8 + $0x90] sm:$0xf]
    %v380 = vld [vmem:[#allocation8 + $0x94] sm:$0xf]
    %v381 = vld [vmem:[#allocation8 + $0x98] sm:$0xf]
    %v382 = vld [vmem:[#allocation8 + $0x9c] sm:$0xf]
    %v383 = vld [vmem:[#allocation8 + $0xa0] sm:$0xf]
    %v384 = vld [vmem:[#allocation8 + $0xa4] sm:$0xf]
    %v385 = vld [vmem:[#allocation8 + $0xa8] sm:$0xf]
    %v386 = vld [vmem:[#allocation8 + $0xac] sm:$0xf]
    %v387 = vld [vmem:[#allocation8 + $0xb0] sm:$0xf]
    %v388 = vld [vmem:[#allocation8 + $0xb4] sm:$0xf]
    %v389 = vld [vmem:[#allocation8 + $0xb8] sm:$0xf]
    %v390 = vld [vmem:[#allocation8 + $0xbc] sm:$0xf]
    %v391 = vld [vmem:[#allocation8 + $0xc0] sm:$0xf]
    %v392 = vld [vmem:[#allocation8 + $0xc4] sm:$0xf]
    %v393 = vld [vmem:[#allocation8 + $0xc8] sm:$0xf]
    %v394 = vld [vmem:[#allocation8 + $0xcc] sm:$0xf]
    %v395 = vld [vmem:[#allocation8 + $0xd0] sm:$0xf]
    %v396 = vld [vmem:[#allocation8 + $0xd4] sm:$0xf]
    %v397 = vld [vmem:[#allocation8 + $0xd8] sm:$0xf]
    %v398 = vld [vmem:[#allocation8 + $0xdc] sm:$0xf]
    %v399 = vld [vmem:[#allocation8 + $0xe0] sm:$0xf]
    %v400 = vld [vmem:[#allocation8 + $0xe4] sm:$0xf]
    %v401 = vld [vmem:[#allocation8 + $0xe8] sm:$0xf]
    %v402 = vld [vmem:[#allocation8 + $0xec] sm:$0xf]
    %v403 = vld [vmem:[#allocation8 + $0xf0] sm:$0xf]
    %v404 = vld [vmem:[#allocation8 + $0xf4] sm:$0xf]
    %v405 = vld [vmem:[#allocation8 + $0xf8] sm:$0xf]
    %v406 = vld [vmem:[#allocation8 + $0xfc] sm:$0xf]
    %v407 = vld [vmem:[#allocation8 + $0x100] sm:$0xf]
    %v408 = vld [vmem:[#allocation8 + $0x104] sm:$0xf]
    %v409 = vld [vmem:[#allocation8 + $0x108] sm:$0xf]
    %v410 = vld [vmem:[#allocation8 + $0x10c] sm:$0xf]
    %v411 = vld [vmem:[#allocation8 + $0x110] sm:$0xf]
    %v412 = vld [vmem:[#allocation8 + $0x114] sm:$0xf]
    %v413 = vld [vmem:[#allocation8 + $0x118] sm:$0xf]
    %v414 = vld [vmem:[#allocation8 + $0x11c] sm:$0xf]
    %v415 = vld [vmem:[#allocation8 + $0x120] sm:$0xf]
    %v416 = vld [vmem:[#allocation8 + $0x124] sm:$0xf]
    %v417 = vld [vmem:[#allocation8 + $0x128] sm:$0xf]
    %v418 = vld [vmem:[#allocation8 + $0x12c] sm:$0xf]
    %v419 = vld [vmem:[#allocation8 + $0x130] sm:$0xf]
    %v420 = vld [vmem:[#allocation8 + $0x134] sm:$0xf]
    %v421 = vld [vmem:[#allocation8 + $0x138] sm:$0xf]
    %v422 = vld [vmem:[#allocation8 + $0x13c] sm:$0xf]
    %v423 = vld [vmem:[#allocation8 + $0x140] sm:$0xf]
    %v424 = vld [vmem:[#allocation8 + $0x144] sm:$0xf]
    %v425 = vld [vmem:[#allocation8 + $0x148] sm:$0xf]
    %v426 = vld [vmem:[#allocation8 + $0x14c] sm:$0xf]
    %v427 = vld [vmem:[#allocation8 + $0x150] sm:$0xf]
    %v428 = vld [vmem:[#allocation8 + $0x154] sm:$0xf]
    %v429 = vld [vmem:[#allocation8 + $0x158] sm:$0xf]
    %v430 = vld [vmem:[#allocation8 + $0x15c] sm:$0xf]
    %v431 = vld [vmem:[#allocation8 + $0x160] sm:$0xf]
    %v432 = vld [vmem:[#allocation8 + $0x164] sm:$0xf]
    %v433 = vld [vmem:[#allocation8 + $0x168] sm:$0xf]
    %v434 = vld [vmem:[#allocation8 + $0x16c] sm:$0xf]
    %v435 = vld [vmem:[#allocation8 + $0x170] sm:$0xf]
    %v436 = vld [vmem:[#allocation8 + $0x174] sm:$0xf]
    %v437 = vld [vmem:[#allocation8 + $0x178] sm:$0xf]
    %v438 = vld [vmem:[#allocation8 + $0x17c] sm:$0xf]
    %v439 = vld [vmem:[#allocation8 + $0x180] sm:$0xf]
    %v440 = vld [vmem:[#allocation8 + $0x184] sm:$0xf]
    %v441 = vld [vmem:[#allocation8 + $0x188] sm:$0xf]
    %v442 = vld [vmem:[#allocation8 + $0x18c] sm:$0xf]
    %v443 = vld [vmem:[#allocation8 + $0x190] sm:$0xf]
    %v444 = vld [vmem:[#allocation8 + $0x194] sm:$0xf]
    %v445 = vld [vmem:[#allocation8 + $0x198] sm:$0xf]
    %v446 = vld [vmem:[#allocation8 + $0x19c] sm:$0xf]
    %v447 = vld [vmem:[#allocation8 + $0x1a0] sm:$0xf]
    %v448 = vld [vmem:[#allocation8 + $0x1a4] sm:$0xf]
    %v449 = vld [vmem:[#allocation8 + $0x1a8] sm:$0xf]
    %v450 = vld [vmem:[#allocation8 + $0x1ac] sm:$0xf]
    %v451 = vld [vmem:[#allocation8 + $0x1b0] sm:$0xf]
    %v452 = vld [vmem:[#allocation8 + $0x1b4] sm:$0xf]
    %v453 = vld [vmem:[#allocation8 + $0x1b8] sm:$0xf]
    %v454 = vld [vmem:[#allocation8 + $0x1bc] sm:$0xf]
    %v455 = vld [vmem:[#allocation8 + $0x1c0] sm:$0xf]
    %v456 = vld [vmem:[#allocation8 + $0x1c4] sm:$0xf]
    %v457 = vld [vmem:[#allocation8 + $0x1c8] sm:$0xf]
    %v458 = vld [vmem:[#allocation8 + $0x1cc] sm:$0xf]
    %v459 = vld [vmem:[#allocation8 + $0x1d0] sm:$0xf]
    %v460 = vld [vmem:[#allocation8 + $0x1d4] sm:$0xf]
    %v461 = vld [vmem:[#allocation8 + $0x1d8] sm:$0xf]
    %v462 = vld [vmem:[#allocation8 + $0x1dc] sm:$0xf]
    %v463 = vld [vmem:[#allocation8 + $0x1e0] sm:$0xf]
    %v464 = vld [vmem:[#allocation8 + $0x1e4] sm:$0xf]
    %v465 = vld [vmem:[#allocation8 + $0x1e8] sm:$0xf]
    %v466 = vld [vmem:[#allocation8 + $0x1ec] sm:$0xf]
    %v467 = vld [vmem:[#allocation8 + $0x1f0] sm:$0xf]
    %v468 = vld [vmem:[#allocation8 + $0x1f4] sm:$0xf]
    %v469 = vld [vmem:[#allocation8 + $0x1f8] sm:$0xf]
    %v470 = vld [vmem:[#allocation8 + $0x1fc] sm:$0xf]
    %v471 = vld [vmem:[%s4] sm:$0x1]
    %v600 = vunpack.c.l.b16 %v343
    %v601 = vunpack.c.l.b16 %v344
    %v602 = vunpack.c.l.b16 %v345
    %v603 = vunpack.c.l.b16 %v346
    %v604 = vunpack.c.l.b16 %v347
    %v605 = vunpack.c.l.b16 %v348
    %v606 = vunpack.c.l.b16 %v349
    %v607 = vunpack.c.l.b16 %v350
    %v608 = vunpack.c.l.b16 %v351
    %v609 = vunpack.c.l.b16 %v352
    %v610 = vunpack.c.l.b16 %v353
    %v611 = vunpack.c.l.b16 %v354
    %v612 = vunpack.c.l.b16 %v355
    %v613 = vunpack.c.l.b16 %v356
    %v614 = vunpack.c.l.b16 %v357
    %v615 = vunpack.c.l.b16 %v358
    %v616 = vunpack.c.l.b16 %v359
    %v617 = vunpack.c.l.b16 %v360
    %v618 = vunpack.c.l.b16 %v361
    %v619 = vunpack.c.l.b16 %v362
    %v620 = vunpack.c.l.b16 %v363
    %v621 = vunpack.c.l.b16 %v364
    %v622 = vunpack.c.l.b16 %v365
    %v623 = vunpack.c.l.b16 %v366
    %v624 = vunpack.c.l.b16 %v367
    %v625 = vunpack.c.l.b16 %v368
    %v626 = vunpack.c.l.b16 %v369
    %v627 = vunpack.c.l.b16 %v370
    %v628 = vunpack.c.l.b16 %v371
    %v629 = vunpack.c.l.b16 %v372
    %v630 = vunpack.c.l.b16 %v373
    %v631 = vunpack.c.l.b16 %v374
    %v632 = vunpack.c.l.b16 %v375
    %v633 = vunpack.c.l.b16 %v376
    %v634 = vunpack.c.l.b16 %v377
    %v635 = vunpack.c.l.b16 %v378
    %v636 = vunpack.c.l.b16 %v379
    %v637 = vunpack.c.l.b16 %v380
    %v638 = vunpack.c.l.b16 %v381
    %v639 = vunpack.c.l.b16 %v382
    %v640 = vunpack.c.l.b16 %v383
    %v641 = vunpack.c.l.b16 %v384
    %v642 = vunpack.c.l.b16 %v385
    %v643 = vunpack.c.l.b16 %v386
    %v644 = vunpack.c.l.b16 %v387
    %v645 = vunpack.c.l.b16 %v388
    %v646 = vunpack.c.l.b16 %v389
    %v647 = vunpack.c.l.b16 %v390
    %v648 = vunpack.c.l.b16 %v391
    %v649 = vunpack.c.l.b16 %v392
    %v650 = vunpack.c.l.b16 %v393
    %v651 = vunpack.c.l.b16 %v394
    %v652 = vunpack.c.l.b16 %v395
    %v653 = vunpack.c.l.b16 %v396
    %v654 = vunpack.c.l.b16 %v397
    %v655 = vunpack.c.l.b16 %v398
    %v656 = vunpack.c.l.b16 %v399
    %v657 = vunpack.c.l.b16 %v400
    %v658 = vunpack.c.l.b16 %v401
    %v659 = vunpack.c.l.b16 %v402
    %v660 = vunpack.c.l.b16 %v403
    %v661 = vunpack.c.l.b16 %v404
    %v662 = vunpack.c.l.b16 %v405
    %v663 = vunpack.c.l.b16 %v406
    %v664 = vunpack.c.l.b16 %v407
    %v665 = vunpack.c.l.b16 %v408
    %v666 = vunpack.c.l.b16 %v409
    %v667 = vunpack.c.l.b16 %v410
    %v668 = vunpack.c.l.b16 %v411
    %v669 = vunpack.c.l.b16 %v412
    %v670 = vunpack.c.l.b16 %v413
    %v671 = vunpack.c.l.b16 %v414
    %v672 = vunpack.c.l.b16 %v415
    %v673 = vunpack.c.l.b16 %v416
    %v674 = vunpack.c.l.b16 %v417
    %v675 = vunpack.c.l.b16 %v418
    %v676 = vunpack.c.l.b16 %v419
    %v677 = vunpack.c.l.b16 %v420
    %v678 = vunpack.c.l.b16 %v421
    %v679 = vunpack.c.l.b16 %v422
    %v680 = vunpack.c.l.b16 %v423
    %v681 = vunpack.c.l.b16 %v424
    %v682 = vunpack.c.l.b16 %v425
    %v683 = vunpack.c.l.b16 %v426
    %v684 = vunpack.c.l.b16 %v427
    %v685 = vunpack.c.l.b16 %v428
    %v686 = vunpack.c.l.b16 %v429
    %v687 = vunpack.c.l.b16 %v430
    %v688 = vunpack.c.l.b16 %v431
    %v689 = vunpack.c.l.b16 %v432
    %v690 = vunpack.c.l.b16 %v433
    %v691 = vunpack.c.l.b16 %v434
    %v692 = vunpack.c.l.b16 %v435
    %v693 = vunpack.c.l.b16 %v436
    %v694 = vunpack.c.l.b16 %v437
    %v695 = vunpack.c.l.b16 %v438
    %v696 = vunpack.c.l.b16 %v439
    %v697 = vunpack.c.l.b16 %v440
    %v698 = vunpack.c.l.b16 %v441
    %v699 = vunpack.c.l.b16 %v442
    %v700 = vunpack.c.l.b16 %v443
    %v701 = vunpack.c.l.b16 %v444
    %v702 = vunpack.c.l.b16 %v445
    %v703 = vunpack.c.l.b16 %v446
    %v704 = vunpack.c.l.b16 %v447
    %v705 = vunpack.c.l.b16 %v448
    %v706 = vunpack.c.l.b16 %v449
    %v707 = vunpack.c.l.b16 %v450
    %v708 = vunpack.c.l.b16 %v451
    %v709 = vunpack.c.l.b16 %v452
    %v710 = vunpack.c.l.b16 %v453
    %v711 = vunpack.c.l.b16 %v454
    %v712 = vunpack.c.l.b16 %v455
    %v713 = vunpack.c.l.b16 %v456
    %v714 = vunpack.c.l.b16 %v457
    %v715 = vunpack.c.l.b16 %v458
    %v716 = vunpack.c.l.b16 %v459
    %v717 = vunpack.c.l.b16 %v460
    %v718 = vunpack.c.l.b16 %v461
    %v719 = vunpack.c.l.b16 %v462
    %v720 = vunpack.c.l.b16 %v463
    %v721 = vunpack.c.l.b16 %v464
    %v722 = vunpack.c.l.b16 %v465
    %v723 = vunpack.c.l.b16 %v466
    %v724 = vunpack.c.l.b16 %v467
    %v725 = vunpack.c.l.b16 %v468
    %v726 = vunpack.c.l.b16 %v469
    %v727 = vunpack.c.l.b16 %v470
    %v728 = vpack.c.b16 %v601, %v600
    %v729 = vpack.c.b16 %v603, %v602
    %v730 = vpack.c.b16 %v605, %v604
    %v731 = vpack.c.b16 %v607, %v606
    %v732 = vpack.c.b16 %v609, %v608
    %v733 = vpack.c.b16 %v611, %v610
    %v734 = vpack.c.b16 %v613, %v612
    %v735 = vpack.c.b16 %v615, %v614
    %v736 = vpack.c.b16 %v617, %v616
    %v737 = vpack.c.b16 %v619, %v618
    %v738 = vpack.c.b16 %v621, %v620
    %v739 = vpack.c.b16 %v623, %v622
    %v740 = vpack.c.b16 %v625, %v624
    %v741 = vpack.c.b16 %v627, %v626
    %v742 = vpack.c.b16 %v629, %v628
    %v743 = vpack.c.b16 %v631, %v630
    %v744 = vpack.c.b16 %v633, %v632
    %v745 = vpack.c.b16 %v635, %v634
    %v746 = vpack.c.b16 %v637, %v636
    %v747 = vpack.c.b16 %v639, %v638
    %v748 = vpack.c.b16 %v641, %v640
    %v749 = vpack.c.b16 %v643, %v642
    %v750 = vpack.c.b16 %v645, %v644
    %v751 = vpack.c.b16 %v647, %v646
    %v752 = vpack.c.b16 %v649, %v648
    %v753 = vpack.c.b16 %v651, %v650
    %v754 = vpack.c.b16 %v653, %v652
    %v755 = vpack.c.b16 %v655, %v654
    %v756 = vpack.c.b16 %v657, %v656
    %v757 = vpack.c.b16 %v659, %v658
    %v758 = vpack.c.b16 %v661, %v660
    %v759 = vpack.c.b16 %v663, %v662
    %v760 = vpack.c.b16 %v665, %v664
    %v761 = vpack.c.b16 %v667, %v666
    %v762 = vpack.c.b16 %v669, %v668
    %v763 = vpack.c.b16 %v671, %v670
    %v764 = vpack.c.b16 %v673, %v672
    %v765 = vpack.c.b16 %v675, %v674
    %v766 = vpack.c.b16 %v677, %v676
    %v767 = vpack.c.b16 %v679, %v678
    %v768 = vpack.c.b16 %v681, %v680
    %v769 = vpack.c.b16 %v683, %v682
    %v770 = vpack.c.b16 %v685, %v684
    %v771 = vpack.c.b16 %v687, %v686
    %v772 = vpack.c.b16 %v689, %v688
    %v773 = vpack.c.b16 %v691, %v690
    %v774 = vpack.c.b16 %v693, %v692
    %v775 = vpack.c.b16 %v695, %v694
    %v776 = vpack.c.b16 %v697, %v696
    %v777 = vpack.c.b16 %v699, %v698
    %v778 = vpack.c.b16 %v701, %v700
    %v779 = vpack.c.b16 %v703, %v702
    %v780 = vpack.c.b16 %v705, %v704
    %v781 = vpack.c.b16 %v707, %v706
    %v782 = vpack.c.b16 %v709, %v708
    %v783 = vpack.c.b16 %v711, %v710
    %v784 = vpack.c.b16 %v713, %v712
    %v785 = vpack.c.b16 %v715, %v714
    %v786 = vpack.c.b16 %v717, %v716
    %v787 = vpack.c.b16 %v719, %v718
    %v788 = vpack.c.b16 %v721, %v720
    %v789 = vpack.c.b16 %v723, %v722
    %v790 = vpack.c.b16 %v725, %v724
    %v791 = vpack.c.b16 %v727, %v726
    %856 = vmatpush.bf16.msra.mxu0 %v735
    %857 = vmatpush.bf16.msra.mxu0 %v734
    %858 = vmatpush.bf16.msra.mxu0 %v733
    %859 = vmatpush.bf16.msra.mxu0 %v732
    %860 = vmatpush.bf16.msra.mxu0 %v731
    %861 = vmatpush.bf16.msra.mxu0 %v730
    %862 = vmatpush.bf16.msra.mxu0 %v729
    %863 = vmatpush.bf16.msra.mxu0 %v728
    %864 = vmatmul.bf16.gmra.mxu0 %v207
    %v865 = vpop.f32.mrf.mxu0
    %v866 = vadd.f32 0.0, %v865
    %v867 = vpop.f32.mrf.mxu0
    %868 = vdwg.mxu0
    %869 = vmatpush.bf16.msra.mxu0 %v743
    %870 = vmatpush.bf16.msra.mxu0 %v742
    %871 = vmatpush.bf16.msra.mxu0 %v741
    %872 = vmatpush.bf16.msra.mxu0 %v740
    %873 = vmatpush.bf16.msra.mxu0 %v739
    %874 = vmatpush.bf16.msra.mxu0 %v738
    %875 = vmatpush.bf16.msra.mxu0 %v737
    %876 = vmatpush.bf16.msra.mxu0 %v736
    %877 = vmatmul.bf16.gmra.mxu0 %v208
    %v878 = vpop.f32.mrf.mxu0
    %v879 = vadd.f32 %v866, %v878
    %v880 = vpop.f32.mrf.mxu0
    %881 = vdwg.mxu0
    %882 = vmatpush.bf16.msra.mxu0 %v751
    %883 = vmatpush.bf16.msra.mxu0 %v750
    %884 = vmatpush.bf16.msra.mxu0 %v749
    %885 = vmatpush.bf16.msra.mxu0 %v748
    %886 = vmatpush.bf16.msra.mxu0 %v747
    %887 = vmatpush.bf16.msra.mxu0 %v746
    %888 = vmatpush.bf16.msra.mxu0 %v745
    %889 = vmatpush.bf16.msra.mxu0 %v744
    %890 = vmatmul.bf16.gmra.mxu0 %v209
    %v891 = vpop.f32.mrf.mxu0
    %v892 = vadd.f32 %v879, %v891
    %v893 = vpop.f32.mrf.mxu0
    %894 = vdwg.mxu0
    %895 = vmatpush.bf16.msra.mxu0 %v759
    %896 = vmatpush.bf16.msra.mxu0 %v758
    %897 = vmatpush.bf16.msra.mxu0 %v757
    %898 = vmatpush.bf16.msra.mxu0 %v756
    %899 = vmatpush.bf16.msra.mxu0 %v755
    %900 = vmatpush.bf16.msra.mxu0 %v754
    %901 = vmatpush.bf16.msra.mxu0 %v753
    %902 = vmatpush.bf16.msra.mxu0 %v752
    %903 = vmatmul.bf16.gmra.mxu0 %v210
    %v904 = vpop.f32.mrf.mxu0
    %v905 = vadd.f32 %v892, %v904
    %v906 = vpop.f32.mrf.mxu0
    %907 = vdwg.mxu0
    %908 = vmatpush.bf16.msra.mxu0 %v767
    %909 = vmatpush.bf16.msra.mxu0 %v766
    %910 = vmatpush.bf16.msra.mxu0 %v765
    %911 = vmatpush.bf16.msra.mxu0 %v764
    %912 = vmatpush.bf16.msra.mxu0 %v763
    %913 = vmatpush.bf16.msra.mxu0 %v762
    %914 = vmatpush.bf16.msra.mxu0 %v761
    %915 = vmatpush.bf16.msra.mxu0 %v760
    %916 = vmatmul.bf16.gmra.mxu0 %v211
    %v917 = vpop.f32.mrf.mxu0
    %v918 = vadd.f32 %v905, %v917
    %v919 = vpop.f32.mrf.mxu0
    %920 = vdwg.mxu0
    %921 = vmatpush.bf16.msra.mxu0 %v775
    %922 = vmatpush.bf16.msra.mxu0 %v774
    %923 = vmatpush.bf16.msra.mxu0 %v773
    %924 = vmatpush.bf16.msra.mxu0 %v772
    %925 = vmatpush.bf16.msra.mxu0 %v771
    %926 = vmatpush.bf16.msra.mxu0 %v770
    %927 = vmatpush.bf16.msra.mxu0 %v769
    %928 = vmatpush.bf16.msra.mxu0 %v768
    %929 = vmatmul.bf16.gmra.mxu0 %v212
    %v930 = vpop.f32.mrf.mxu0
    %v931 = vadd.f32 %v918, %v930
    %v932 = vpop.f32.mrf.mxu0
    %933 = vdwg.mxu0
    %934 = vmatpush.bf16.msra.mxu0 %v783
    %935 = vmatpush.bf16.msra.mxu0 %v782
    %936 = vmatpush.bf16.msra.mxu0 %v781
    %937 = vmatpush.bf16.msra.mxu0 %v780
    %938 = vmatpush.bf16.msra.mxu0 %v779
    %939 = vmatpush.bf16.msra.mxu0 %v778
    %940 = vmatpush.bf16.msra.mxu0 %v777
    %941 = vmatpush.bf16.msra.mxu0 %v776
    %942 = vmatmul.bf16.gmra.mxu0 %v213
    %v943 = vpop.f32.mrf.mxu0
    %v944 = vadd.f32 %v931, %v943
    %v945 = vpop.f32.mrf.mxu0
    %946 = vdwg.mxu0
    %947 = vmatpush.bf16.msra.mxu0 %v791
    %948 = vmatpush.bf16.msra.mxu0 %v790
    %949 = vmatpush.bf16.msra.mxu0 %v789
    %950 = vmatpush.bf16.msra.mxu0 %v788
    %951 = vmatpush.bf16.msra.mxu0 %v787
    %952 = vmatpush.bf16.msra.mxu0 %v786
    %953 = vmatpush.bf16.msra.mxu0 %v785
    %954 = vmatpush.bf16.msra.mxu0 %v784
    %955 = vmatmul.bf16.gmra.mxu0 %v214
    %v956 = vpop.f32.mrf.mxu0
    %v957 = vadd.f32 %v944, %v956
    %v958 = vpop.f32.mrf.mxu0
    %959 = vdwg.mxu0
    %v1088 = vunpack.c.l.b16 %v215
    %v1089 = vunpack.c.l.b16 %v216
    %v1090 = vunpack.c.l.b16 %v217
    %v1091 = vunpack.c.l.b16 %v218
    %v1092 = vunpack.c.l.b16 %v219
    %v1093 = vunpack.c.l.b16 %v220
    %v1094 = vunpack.c.l.b16 %v221
    %v1095 = vunpack.c.l.b16 %v222
    %v1096 = vunpack.c.l.b16 %v223
    %v1097 = vunpack.c.l.b16 %v224
    %v1098 = vunpack.c.l.b16 %v225
    %v1099 = vunpack.c.l.b16 %v226
    %v1100 = vunpack.c.l.b16 %v227
    %v1101 = vunpack.c.l.b16 %v228
    %v1102 = vunpack.c.l.b16 %v229
    %v1103 = vunpack.c.l.b16 %v230
    %v1104 = vunpack.c.l.b16 %v231
    %v1105 = vunpack.c.l.b16 %v232
    %v1106 = vunpack.c.l.b16 %v233
    %v1107 = vunpack.c.l.b16 %v234
    %v1108 = vunpack.c.l.b16 %v235
    %v1109 = vunpack.c.l.b16 %v236
    %v1110 = vunpack.c.l.b16 %v237
    %v1111 = vunpack.c.l.b16 %v238
    %v1112 = vunpack.c.l.b16 %v239
    %v1113 = vunpack.c.l.b16 %v240
    %v1114 = vunpack.c.l.b16 %v241
    %v1115 = vunpack.c.l.b16 %v242
    %v1116 = vunpack.c.l.b16 %v243
    %v1117 = vunpack.c.l.b16 %v244
    %v1118 = vunpack.c.l.b16 %v245
    %v1119 = vunpack.c.l.b16 %v246
    %v1120 = vunpack.c.l.b16 %v247
    %v1121 = vunpack.c.l.b16 %v248
    %v1122 = vunpack.c.l.b16 %v249
    %v1123 = vunpack.c.l.b16 %v250
    %v1124 = vunpack.c.l.b16 %v251
    %v1125 = vunpack.c.l.b16 %v252
    %v1126 = vunpack.c.l.b16 %v253
    %v1127 = vunpack.c.l.b16 %v254
    %v1128 = vunpack.c.l.b16 %v255
    %v1129 = vunpack.c.l.b16 %v256
    %v1130 = vunpack.c.l.b16 %v257
    %v1131 = vunpack.c.l.b16 %v258
    %v1132 = vunpack.c.l.b16 %v259
    %v1133 = vunpack.c.l.b16 %v260
    %v1134 = vunpack.c.l.b16 %v261
    %v1135 = vunpack.c.l.b16 %v262
    %v1136 = vunpack.c.l.b16 %v263
    %v1137 = vunpack.c.l.b16 %v264
    %v1138 = vunpack.c.l.b16 %v265
    %v1139 = vunpack.c.l.b16 %v266
    %v1140 = vunpack.c.l.b16 %v267
    %v1141 = vunpack.c.l.b16 %v268
    %v1142 = vunpack.c.l.b16 %v269
    %v1143 = vunpack.c.l.b16 %v270
    %v1144 = vunpack.c.l.b16 %v271
    %v1145 = vunpack.c.l.b16 %v272
    %v1146 = vunpack.c.l.b16 %v273
    %v1147 = vunpack.c.l.b16 %v274
    %v1148 = vunpack.c.l.b16 %v275
    %v1149 = vunpack.c.l.b16 %v276
    %v1150 = vunpack.c.l.b16 %v277
    %v1151 = vunpack.c.l.b16 %v278
    %v1152 = vunpack.c.l.b16 %v279
    %v1153 = vunpack.c.l.b16 %v280
    %v1154 = vunpack.c.l.b16 %v281
    %v1155 = vunpack.c.l.b16 %v282
    %v1156 = vunpack.c.l.b16 %v283
    %v1157 = vunpack.c.l.b16 %v284
    %v1158 = vunpack.c.l.b16 %v285
    %v1159 = vunpack.c.l.b16 %v286
    %v1160 = vunpack.c.l.b16 %v287
    %v1161 = vunpack.c.l.b16 %v288
    %v1162 = vunpack.c.l.b16 %v289
    %v1163 = vunpack.c.l.b16 %v290
    %v1164 = vunpack.c.l.b16 %v291
    %v1165 = vunpack.c.l.b16 %v292
    %v1166 = vunpack.c.l.b16 %v293
    %v1167 = vunpack.c.l.b16 %v294
    %v1168 = vunpack.c.l.b16 %v295
    %v1169 = vunpack.c.l.b16 %v296
    %v1170 = vunpack.c.l.b16 %v297
    %v1171 = vunpack.c.l.b16 %v298
    %v1172 = vunpack.c.l.b16 %v299
    %v1173 = vunpack.c.l.b16 %v300
    %v1174 = vunpack.c.l.b16 %v301
    %v1175 = vunpack.c.l.b16 %v302
    %v1176 = vunpack.c.l.b16 %v303
    %v1177 = vunpack.c.l.b16 %v304
    %v1178 = vunpack.c.l.b16 %v305
    %v1179 = vunpack.c.l.b16 %v306
    %v1180 = vunpack.c.l.b16 %v307
    %v1181 = vunpack.c.l.b16 %v308
    %v1182 = vunpack.c.l.b16 %v309
    %v1183 = vunpack.c.l.b16 %v310
    %v1184 = vunpack.c.l.b16 %v311
    %v1185 = vunpack.c.l.b16 %v312
    %v1186 = vunpack.c.l.b16 %v313
    %v1187 = vunpack.c.l.b16 %v314
    %v1188 = vunpack.c.l.b16 %v315
    %v1189 = vunpack.c.l.b16 %v316
    %v1190 = vunpack.c.l.b16 %v317
    %v1191 = vunpack.c.l.b16 %v318
    %v1192 = vunpack.c.l.b16 %v319
    %v1193 = vunpack.c.l.b16 %v320
    %v1194 = vunpack.c.l.b16 %v321
    %v1195 = vunpack.c.l.b16 %v322
    %v1196 = vunpack.c.l.b16 %v323
    %v1197 = vunpack.c.l.b16 %v324
    %v1198 = vunpack.c.l.b16 %v325
    %v1199 = vunpack.c.l.b16 %v326
    %v1200 = vunpack.c.l.b16 %v327
    %v1201 = vunpack.c.l.b16 %v328
    %v1202 = vunpack.c.l.b16 %v329
    %v1203 = vunpack.c.l.b16 %v330
    %v1204 = vunpack.c.l.b16 %v331
    %v1205 = vunpack.c.l.b16 %v332
    %v1206 = vunpack.c.l.b16 %v333
    %v1207 = vunpack.c.l.b16 %v334
    %v1208 = vunpack.c.l.b16 %v335
    %v1209 = vunpack.c.l.b16 %v336
    %v1210 = vunpack.c.l.b16 %v337
    %v1211 = vunpack.c.l.b16 %v338
    %v1212 = vunpack.c.l.b16 %v339
    %v1213 = vunpack.c.l.b16 %v340
    %v1214 = vunpack.c.l.b16 %v341
    %v1215 = vunpack.c.l.b16 %v342
    %v1216 = vpack.c.b16 %v1089, %v1088
    %v1217 = vpack.c.b16 %v1091, %v1090
    %v1218 = vpack.c.b16 %v1093, %v1092
    %v1219 = vpack.c.b16 %v1095, %v1094
    %v1220 = vpack.c.b16 %v1097, %v1096
    %v1221 = vpack.c.b16 %v1099, %v1098
    %v1222 = vpack.c.b16 %v1101, %v1100
    %v1223 = vpack.c.b16 %v1103, %v1102
    %v1224 = vpack.c.b16 %v1105, %v1104
    %v1225 = vpack.c.b16 %v1107, %v1106
    %v1226 = vpack.c.b16 %v1109, %v1108
    %v1227 = vpack.c.b16 %v1111, %v1110
    %v1228 = vpack.c.b16 %v1113, %v1112
    %v1229 = vpack.c.b16 %v1115, %v1114
    %v1230 = vpack.c.b16 %v1117, %v1116
    %v1231 = vpack.c.b16 %v1119, %v1118
    %v1232 = vpack.c.b16 %v1121, %v1120
    %v1233 = vpack.c.b16 %v1123, %v1122
    %v1234 = vpack.c.b16 %v1125, %v1124
    %v1235 = vpack.c.b16 %v1127, %v1126
    %v1236 = vpack.c.b16 %v1129, %v1128
    %v1237 = vpack.c.b16 %v1131, %v1130
    %v1238 = vpack.c.b16 %v1133, %v1132
    %v1239 = vpack.c.b16 %v1135, %v1134
    %v1240 = vpack.c.b16 %v1137, %v1136
    %v1241 = vpack.c.b16 %v1139, %v1138
    %v1242 = vpack.c.b16 %v1141, %v1140
    %v1243 = vpack.c.b16 %v1143, %v1142
    %v1244 = vpack.c.b16 %v1145, %v1144
    %v1245 = vpack.c.b16 %v1147, %v1146
    %v1246 = vpack.c.b16 %v1149, %v1148
    %v1247 = vpack.c.b16 %v1151, %v1150
    %v1248 = vpack.c.b16 %v1153, %v1152
    %v1249 = vpack.c.b16 %v1155, %v1154
    %v1250 = vpack.c.b16 %v1157, %v1156
    %v1251 = vpack.c.b16 %v1159, %v1158
    %v1252 = vpack.c.b16 %v1161, %v1160
    %v1253 = vpack.c.b16 %v1163, %v1162
    %v1254 = vpack.c.b16 %v1165, %v1164
    %v1255 = vpack.c.b16 %v1167, %v1166
    %v1256 = vpack.c.b16 %v1169, %v1168
    %v1257 = vpack.c.b16 %v1171, %v1170
    %v1258 = vpack.c.b16 %v1173, %v1172
    %v1259 = vpack.c.b16 %v1175, %v1174
    %v1260 = vpack.c.b16 %v1177, %v1176
    %v1261 = vpack.c.b16 %v1179, %v1178
    %v1262 = vpack.c.b16 %v1181, %v1180
    %v1263 = vpack.c.b16 %v1183, %v1182
    %v1264 = vpack.c.b16 %v1185, %v1184
    %v1265 = vpack.c.b16 %v1187, %v1186
    %v1266 = vpack.c.b16 %v1189, %v1188
    %v1267 = vpack.c.b16 %v1191, %v1190
    %v1268 = vpack.c.b16 %v1193, %v1192
    %v1269 = vpack.c.b16 %v1195, %v1194
    %v1270 = vpack.c.b16 %v1197, %v1196
    %v1271 = vpack.c.b16 %v1199, %v1198
    %v1272 = vpack.c.b16 %v1201, %v1200
    %v1273 = vpack.c.b16 %v1203, %v1202
    %v1274 = vpack.c.b16 %v1205, %v1204
    %v1275 = vpack.c.b16 %v1207, %v1206
    %v1276 = vpack.c.b16 %v1209, %v1208
    %v1277 = vpack.c.b16 %v1211, %v1210
    %v1278 = vpack.c.b16 %v1213, %v1212
    %v1279 = vpack.c.b16 %v1215, %v1214
    %1344 = vmatpush.bf16.msra.mxu0 %v1223
    %1345 = vmatpush.bf16.msra.mxu0 %v1222
    %1346 = vmatpush.bf16.msra.mxu0 %v1221
    %1347 = vmatpush.bf16.msra.mxu0 %v1220
    %1348 = vmatpush.bf16.msra.mxu0 %v1219
    %1349 = vmatpush.bf16.msra.mxu0 %v1218
    %1350 = vmatpush.bf16.msra.mxu0 %v1217
    %1351 = vmatpush.bf16.msra.mxu0 %v1216
    %1352 = vmatmul.bf16.gmra.mxu0 %v152
    %v1353 = vpop.f32.mrf.mxu0
    %v1354 = vadd.f32 %v957, %v1353
    %v1355 = vpop.f32.mrf.mxu0
    %1356 = vdwg.mxu0
    %1357 = vmatpush.bf16.msra.mxu0 %v1231
    %1358 = vmatpush.bf16.msra.mxu0 %v1230
    %1359 = vmatpush.bf16.msra.mxu0 %v1229
    %1360 = vmatpush.bf16.msra.mxu0 %v1228
    %1361 = vmatpush.bf16.msra.mxu0 %v1227
    %1362 = vmatpush.bf16.msra.mxu0 %v1226
    %1363 = vmatpush.bf16.msra.mxu0 %v1225
    %1364 = vmatpush.bf16.msra.mxu0 %v1224
    %1365 = vmatmul.bf16.gmra.mxu0 %v153
    %v1366 = vpop.f32.mrf.mxu0
    %v1367 = vadd.f32 %v1354, %v1366
    %v1368 = vpop.f32.mrf.mxu0
    %1369 = vdwg.mxu0
    %1370 = vmatpush.bf16.msra.mxu0 %v1239
    %1371 = vmatpush.bf16.msra.mxu0 %v1238
    %1372 = vmatpush.bf16.msra.mxu0 %v1237
    %1373 = vmatpush.bf16.msra.mxu0 %v1236
    %1374 = vmatpush.bf16.msra.mxu0 %v1235
    %1375 = vmatpush.bf16.msra.mxu0 %v1234
    %1376 = vmatpush.bf16.msra.mxu0 %v1233
    %1377 = vmatpush.bf16.msra.mxu0 %v1232
    %1378 = vmatmul.bf16.gmra.mxu0 %v154
    %v1379 = vpop.f32.mrf.mxu0
    %v1380 = vadd.f32 %v1367, %v1379
    %v1381 = vpop.f32.mrf.mxu0
    %1382 = vdwg.mxu0
    %1383 = vmatpush.bf16.msra.mxu0 %v1247
    %1384 = vmatpush.bf16.msra.mxu0 %v1246
    %1385 = vmatpush.bf16.msra.mxu0 %v1245
    %1386 = vmatpush.bf16.msra.mxu0 %v1244
    %1387 = vmatpush.bf16.msra.mxu0 %v1243
    %1388 = vmatpush.bf16.msra.mxu0 %v1242
    %1389 = vmatpush.bf16.msra.mxu0 %v1241
    %1390 = vmatpush.bf16.msra.mxu0 %v1240
    %1391 = vmatmul.bf16.gmra.mxu0 %v155
    %v1392 = vpop.f32.mrf.mxu0
    %v1393 = vadd.f32 %v1380, %v1392
    %v1394 = vpop.f32.mrf.mxu0
    %1395 = vdwg.mxu0
    %1396 = vmatpush.bf16.msra.mxu0 %v1255
    %1397 = vmatpush.bf16.msra.mxu0 %v1254
    %1398 = vmatpush.bf16.msra.mxu0 %v1253
    %1399 = vmatpush.bf16.msra.mxu0 %v1252
    %1400 = vmatpush.bf16.msra.mxu0 %v1251
    %1401 = vmatpush.bf16.msra.mxu0 %v1250
    %1402 = vmatpush.bf16.msra.mxu0 %v1249
    %1403 = vmatpush.bf16.msra.mxu0 %v1248
    %1404 = vmatmul.bf16.gmra.mxu0 %v156
    %v1405 = vpop.f32.mrf.mxu0
    %v1406 = vadd.f32 %v1393, %v1405
    %v1407 = vpop.f32.mrf.mxu0
    %1408 = vdwg.mxu0
    %1409 = vmatpush.bf16.msra.mxu0 %v1263
    %1410 = vmatpush.bf16.msra.mxu0 %v1262
    %1411 = vmatpush.bf16.msra.mxu0 %v1261
    %1412 = vmatpush.bf16.msra.mxu0 %v1260
    %1413 = vmatpush.bf16.msra.mxu0 %v1259
    %1414 = vmatpush.bf16.msra.mxu0 %v1258
    %1415 = vmatpush.bf16.msra.mxu0 %v1257
    %1416 = vmatpush.bf16.msra.mxu0 %v1256
    %1417 = vmatmul.bf16.gmra.mxu0 %v157
    %v1418 = vpop.f32.mrf.mxu0
    %v1419 = vadd.f32 %v1406, %v1418
    %v1420 = vpop.f32.mrf.mxu0
    %1421 = vdwg.mxu0
    %1422 = vmatpush.bf16.msra.mxu0 %v1271
    %1423 = vmatpush.bf16.msra.mxu0 %v1270
    %1424 = vmatpush.bf16.msra.mxu0 %v1269
    %1425 = vmatpush.bf16.msra.mxu0 %v1268
    %1426 = vmatpush.bf16.msra.mxu0 %v1267
    %1427 = vmatpush.bf16.msra.mxu0 %v1266
    %1428 = vmatpush.bf16.msra.mxu0 %v1265
    %1429 = vmatpush.bf16.msra.mxu0 %v1264
    %1430 = vmatmul.bf16.gmra.mxu0 %v158
    %v1431 = vpop.f32.mrf.mxu0
    %v1432 = vadd.f32 %v1419, %v1431
    %v1433 = vpop.f32.mrf.mxu0
    %1434 = vdwg.mxu0
    %1435 = vmatpush.bf16.msra.mxu0 %v1279
    %1436 = vmatpush.bf16.msra.mxu0 %v1278
    %1437 = vmatpush.bf16.msra.mxu0 %v1277
    %1438 = vmatpush.bf16.msra.mxu0 %v1276
    %1439 = vmatpush.bf16.msra.mxu0 %v1275
    %1440 = vmatpush.bf16.msra.mxu0 %v1274
    %1441 = vmatpush.bf16.msra.mxu0 %v1273
    %1442 = vmatpush.bf16.msra.mxu0 %v1272
    %1443 = vmatmul.bf16.gmra.mxu0 %v159
    %v1444 = vpop.f32.mrf.mxu0
    %v1445 = vadd.f32 %v1432, %v1444
    %v1446 = vpop.f32.mrf.mxu0
    %1447 = vdwg.mxu0
    %v1449 = vperm.slane %v471, 0
    %v1451 = vadd.f32 %v1445, %v1449
    %v1452 = vmax.f32 %v1451, 0.0
    %v1453 = vld [vmem:[#allocation10] sm:$0xf]
    %v1454 = vld [vmem:[#allocation10 + $0x4] sm:$0xf]
    %v1455 = vld [vmem:[#allocation10 + $0x8] sm:$0xf]
    %v1456 = vld [vmem:[#allocation10 + $0xc] sm:$0xf]
    %v1457 = vld [vmem:[#allocation10 + $0x10] sm:$0xf]
    %v1458 = vld [vmem:[#allocation10 + $0x14] sm:$0xf]
    %v1459 = vld [vmem:[#allocation10 + $0x18] sm:$0xf]
    %v1460 = vld [vmem:[#allocation10 + $0x1c] sm:$0xf]
    %v1461 = vld [vmem:[#allocation10 + $0x20] sm:$0xf]
    %v1462 = vld [vmem:[#allocation10 + $0x24] sm:$0xf]
    %v1463 = vld [vmem:[#allocation10 + $0x28] sm:$0xf]
    %v1464 = vld [vmem:[#allocation10 + $0x2c] sm:$0xf]
    %v1465 = vld [vmem:[#allocation10 + $0x30] sm:$0xf]
    %v1466 = vld [vmem:[#allocation10 + $0x34] sm:$0xf]
    %v1467 = vld [vmem:[#allocation10 + $0x38] sm:$0xf]
    %v1468 = vld [vmem:[#allocation10 + $0x3c] sm:$0xf]
    %v1469 = vld [vmem:[%s6] sm:$0x1]
    %v1470 = vpack.c.bf16 %v1452, %v1452
    %v1472 = vperm.slane %v1469, 0
    %v1490 = vunpack.c.l.b16 %v1453
    %v1491 = vunpack.c.l.b16 %v1454
    %v1492 = vunpack.c.l.b16 %v1455
    %v1493 = vunpack.c.l.b16 %v1456
    %v1494 = vunpack.c.l.b16 %v1457
    %v1495 = vunpack.c.l.b16 %v1458
    %v1496 = vunpack.c.l.b16 %v1459
    %v1497 = vunpack.c.l.b16 %v1460
    %v1498 = vunpack.c.l.b16 %v1461
    %v1499 = vunpack.c.l.b16 %v1462
    %v1500 = vunpack.c.l.b16 %v1463
    %v1501 = vunpack.c.l.b16 %v1464
    %v1502 = vunpack.c.l.b16 %v1465
    %v1503 = vunpack.c.l.b16 %v1466
    %v1504 = vunpack.c.l.b16 %v1467
    %v1505 = vunpack.c.l.b16 %v1468
    %v1506 = vpack.c.b16 %v1491, %v1490
    %v1507 = vpack.c.b16 %v1493, %v1492
    %v1508 = vpack.c.b16 %v1495, %v1494
    %v1509 = vpack.c.b16 %v1497, %v1496
    %v1510 = vpack.c.b16 %v1499, %v1498
    %v1511 = vpack.c.b16 %v1501, %v1500
    %v1512 = vpack.c.b16 %v1503, %v1502
    %v1513 = vpack.c.b16 %v1505, %v1504
    %1522 = vmatpush.bf16.msra.mxu0 %v1513
    %1523 = vmatpush.bf16.msra.mxu0 %v1512
    %1524 = vmatpush.bf16.msra.mxu0 %v1511
    %1525 = vmatpush.bf16.msra.mxu0 %v1510
    %1526 = vmatpush.bf16.msra.mxu0 %v1509
    %1527 = vmatpush.bf16.msra.mxu0 %v1508
    %1528 = vmatpush.bf16.msra.mxu0 %v1507
    %1529 = vmatpush.bf16.msra.mxu0 %v1506
    %1530 = vmatmul.bf16.gmra.mxu0 %v1470
    %v1531 = vpop.f32.mrf.mxu0
    %v1532 = vadd.f32 %v1472, %v1531
    %v1533 = vpop.f32.mrf.mxu0
    %1534 = vdwg.mxu0
    %1535 = vst [vmem:[#allocation11] sm:$0xff] %v1532
    // Predicated region
    $region50: #{tpu_custom_call.1} parent=1 // pred_check
      _
    $region51: #{tpu_custom_call.1} parent=1 // pred_check_branch
      %1537 = sbr.rel (0) target = $region53
    $region52: #{tpu_custom_call.1} parent=1 // pred_region
      %1539 = vsyncadd [#allocation4], 96
      %s1540 = sshll.u32 [#allocation11], 4
      %s1541 = int_to_ptr.vmem [resolvable:$true] %s1540
      %s1542 = sshll.u32 %s7, 4
      %s1543 = int_to_ptr.hbm [resolvable:$true] %s1542
      %1548 = dma.vmem_to_hbm [thread:$0]  %s1541, 32, %s1543, [#allocation4], 32, 32, 2
    $region53: #{tpu_custom_call.1} parent=1 // pred_fallthru
      _
    // Predicated region
    $region54: #{tpu_custom_call.1} parent=1 // pred_check
      _
    $region55: #{tpu_custom_call.1} parent=1 // pred_check_branch
      %1550 = sbr.rel (0) target = $region57
    $region56: #{tpu_custom_call.1} parent=1 // pred_region
      %1552 = dma.done [#allocation4], 128
    $region57: #{tpu_custom_call.1} parent=1 // pred_fallthru
      _
    %1553 = vsyncpa [#allocation3], 1
    %1554 = vsyncpa [#allocation6], 1
    %1555 = vsyncpa [#allocation9], 1
    %1556 = vsyncpa [#allocation4], 1

</llo_original>
